<compile_context>
chip_gen: v7x
topology: tpu7x:2x2x1
jax: 0.10.0
libtpu: 0.0.40
codegen_flags: <defaults>
</compile_context>

<pallas_src>
from functools import partial

import jax
import jax.numpy as jnp
from jax.experimental import pallas as pl
from jax.experimental.pallas import tpu as pltpu


# TODO(synk): act_layer is a constructor argument in the PyTorch module; SiLU is
# used for the demo.  Swap `act=` for the activation the model actually uses.
def _apply_act(y, act):
    if act == "silu":
        return y * (1.0 / (1.0 + jnp.exp(-y)))
    if act == "relu":
        return jnp.maximum(y, 0.0)
    if act == "leaky_relu":
        return jnp.where(y >= 0.0, y, 0.01 * y)
    if act == "gelu":  # tanh approximation
        c = 0.7978845608028654  # sqrt(2/pi)
        return 0.5 * y * (1.0 + jnp.tanh(c * (y + 0.044715 * y * y * y)))
    if act == "identity":
        return y
    raise ValueError(f"unknown act: {act}")


def _downsample_kernel(x_ref, w_ref, b_ref, o_ref, *, act):
    # x_ref: (K, TILE_M)   w_ref: (C_out, K)   b_ref: (C_out, 1)   o_ref: (C_out, TILE_M)
    x = x_ref[...].astype(jnp.float32)
    w = w_ref[...].astype(jnp.float32)
    b = b_ref[...].astype(jnp.float32)
    y = jnp.dot(w, x, preferred_element_type=jnp.float32) + b   # 1x1 conv == channel matmul
    y = _apply_act(y, act)
    o_ref[...] = y.astype(o_ref.dtype)


def _unshuffle_to_2d(x, r=2):
    """(N,C,H,W) -> (K, M): PixelUnshuffle(r) + channels-to-sublanes in ONE transpose.

    K = C*r*r  (PyTorch PixelUnshuffle channel order: c*r*r + dy*r + dx)
    M = N * (H//r) * (W//r)
    """
    N, C, H, W = x.shape
    assert H % r == 0 and W % r == 0, "spatial dims must be divisible by 2"
    H2, W2 = H // r, W // r
    x = x.reshape(N, C, H2, r, W2, r)
    # (C, r, r, N, H2, W2): channel-major order matches PixelUnshuffle + K-to-front.
    x = jnp.transpose(x, (1, 3, 5, 0, 2, 4))
    return x.reshape(C * r * r, N * H2 * W2), (N, H2, W2)


def _pick_tile_m(M, K, C_out, itemsize, vmem_budget=8 * 1024 * 1024, max_tile=8192):
    """Largest 128-aligned lane tile s.t. double-buffered in+out blocks fit the budget."""
    per_lane = 2 * (K + C_out) * itemsize            # 2 buffers x (in + out) bytes per lane col
    t = vmem_budget // max(per_lane, 1)
    t = min(t, max_tile, max(M, 128))
    t = max(128, (t // 128) * 128)
    return int(t)


def downsample(x, weight, bias, *, act="silu", tile_m=None):
    """Downsample forward.

    x:      (N, C_in, H, W)                               NCHW
    weight: (C_out, 4*C_in, 1, 1) or (C_out, 4*C_in)       1x1 conv weight
    bias:   (C_out,)
    returns (N, C_out, H//2, W//2)
    """
    N, C, H, W = x.shape
    r = 2
    K = C * r * r
    C_out = weight.shape[0]

    # --- layout plumbing (XLA): one fused transpose to (K, M) ---
    x2d, (N_, H2, W2) = _unshuffle_to_2d(x, r)
    M = N_ * H2 * W2

    itemsize = jnp.dtype(x.dtype).itemsize
    if tile_m is None:
        tile_m = _pick_tile_m(M, K, C_out, itemsize)
    else:
        tile_m = max(128, (int(tile_m) // 128) * 128)        # enforce lane alignment

    Mp = ((M + tile_m - 1) // tile_m) * tile_m               # pad instead of giant fallback block
    if Mp != M:
        x2d = jnp.pad(x2d, ((0, 0), (0, Mp - M)))

    w2d = jnp.reshape(weight, (C_out, K))
    b2d = jnp.reshape(bias, (C_out, 1))

    grid = (Mp // tile_m,)
    out2d = pl.pallas_call(
        partial(_downsample_kernel, act=act),
        out_shape=jax.ShapeDtypeStruct((C_out, Mp), x.dtype),
        grid_spec=pltpu.PrefetchScalarGridSpec(
            num_scalar_prefetch=0,
            grid=grid,
            in_specs=[
                pl.BlockSpec((K, tile_m), lambda m: (0, m)),      # activations tile (streamed)
                pl.BlockSpec((C_out, K), lambda m: (0, 0)),       # conv weight (VMEM-resident)
                pl.BlockSpec((C_out, 1), lambda m: (0, 0)),       # bias (VMEM-resident)
            ],
            out_specs=pl.BlockSpec((C_out, tile_m), lambda m: (0, m)),
        ),
        compiler_params=pltpu.CompilerParams(
            dimension_semantics=("parallel",),                    # shards M-tiles across v7x's 2 TCs
        ),
    )(x2d, w2d, b2d)

    out2d = out2d[:, :M]
    out = out2d.reshape(C_out, N, H2, W2).transpose(1, 0, 2, 3)   # back to NCHW
    return out


def _reference(x, weight, bias, act="silu"):
    """Pure-JAX reference: PixelUnshuffle(2) -> 1x1 conv -> activation."""
    N, C, H, W = x.shape
    r = 2
    H2, W2 = H // r, W // r
    xu = x.reshape(N, C, H2, r, W2, r)
    xu = jnp.transpose(xu, (0, 1, 3, 5, 2, 4)).reshape(N, C * r * r, H2, W2)
    xu = xu.astype(jnp.float32)
    C_out = weight.shape[0]
    K = xu.shape[1]
    w2d = jnp.reshape(weight, (C_out, K)).astype(jnp.float32)
    y = jnp.einsum("nkhw,ok->nohw", xu, w2d) + jnp.reshape(bias, (1, C_out, 1, 1)).astype(jnp.float32)
    return _apply_act(y, act).astype(x.dtype)


if __name__ == "__main__":
    key = jax.random.PRNGKey(0)
    k_x, k_w, k_b = jax.random.split(key, 3)

    N, C_in, H, W = 2, 4, 16, 16
    C_out = 8

    x = jax.random.normal(k_x, (N, C_in, H, W), dtype=jnp.float32)

    # Mimic init_conv_: kaiming-style base weight repeated 4x along input
    # channels ('o i -> o (i 4)'), i.e. each input channel repeated 4 times.
    w_base = jax.random.normal(k_w, (C_out, C_in, 1, 1), dtype=jnp.float32) * (2.0 / C_in) ** 0.5
    weight = jnp.repeat(w_base, 4, axis=1)                        # (C_out, 4*C_in, 1, 1)
    # Module init zeroes the bias; use a random bias to exercise the bias path
    # (forward semantics are identical).
    bias = 0.1 * jax.random.normal(k_b, (C_out,), dtype=jnp.float32)

    out = downsample(x, weight, bias, act="silu")
    out = jax.block_until_ready(out)

    ref = _reference(x, weight, bias, act="silu")
    assert out.shape == (N, C_out, H // 2, W // 2), out.shape
    assert jnp.allclose(out, ref, atol=1e-5, rtol=1e-5), "mismatch vs reference"

    print("KERNEL_OK")
</pallas_src>

<mosaic_0001>
module attributes {stable_mosaic.version = 11 : i64} {
  func.func @_downsample_kernel(%arg0: i32, %arg1: memref<16x128xf32, #tpu.memory_space<vmem>>, %arg2: memref<8x16xf32, #tpu.memory_space<vmem>>, %arg3: memref<8x1xf32, #tpu.memory_space<vmem>>, %arg4: memref<8x128xf32, #tpu.memory_space<vmem>>) attributes {dimension_semantics = [#tpu.dimension_semantics<parallel>], iteration_bounds = array<i64: 1>, scalar_prefetch = 0 : i64, scratch_operands = 0 : i64, tpu.core_type = #tpu.core_type<tc>, window_params = [{transform_indices = @transform_0, window_bounds = array<i64: 16, 128>}, {pipeline_mode = #tpu.pipeline_mode<synchronous>, transform_indices = @transform_1, window_bounds = array<i64: 8, 16>}, {pipeline_mode = #tpu.pipeline_mode<synchronous>, transform_indices = @transform_2, window_bounds = array<i64: 8, 1>}, {transform_indices = @transform_3, window_bounds = array<i64: 8, 128>}]} {
    %c0 = arith.constant 0 : index
    %c0_0 = arith.constant 0 : index
    %0 = vector.load %arg1[%c0, %c0_0] : memref<16x128xf32, #tpu.memory_space<vmem>>, vector<16x128xf32>
    %c0_1 = arith.constant 0 : index
    %c0_2 = arith.constant 0 : index
    %1 = vector.load %arg2[%c0_1, %c0_2] : memref<8x16xf32, #tpu.memory_space<vmem>>, vector<8x16xf32>
    %c0_3 = arith.constant 0 : index
    %c0_4 = arith.constant 0 : index
    %2 = vector.load %arg3[%c0_3, %c0_4] : memref<8x1xf32, #tpu.memory_space<vmem>>, vector<8x1xf32>
    %cst = arith.constant dense<0.000000e+00> : vector<8x128xf32>
    %3 = tpu.matmul %1, %0, %cst {dimension_numbers = #tpu.dot_dimension_numbers<[1], [0], [0], [1], [0, 0, 1, 1], [], []>} : vector<8x16xf32>, vector<16x128xf32>, vector<8x128xf32> -> vector<8x128xf32>
    %4 = vector.broadcast %2 : vector<8x1xf32> to vector<8x128xf32>
    %5 = arith.addf %3, %4 : vector<8x128xf32>
    %cst_5 = arith.constant 0.000000e+00 : f32
    %6 = vector.broadcast %cst_5 : f32 to vector<8x128xf32>
    %7 = arith.subf %6, %5 : vector<8x128xf32>
    %8 = math.exp %7 : vector<8x128xf32>
    %cst_6 = arith.constant 1.000000e+00 : f32
    %9 = vector.broadcast %cst_6 : f32 to vector<8x128xf32>
    %10 = arith.addf %9, %8 : vector<8x128xf32>
    %cst_7 = arith.constant 1.000000e+00 : f32
    %11 = vector.broadcast %cst_7 : f32 to vector<8x128xf32>
    %12 = arith.divf %11, %10 : vector<8x128xf32>
    %13 = arith.mulf %5, %12 : vector<8x128xf32>
    %c0_8 = arith.constant 0 : index
    %c0_9 = arith.constant 0 : index
    %14 = vector.load %arg4[%c0_8, %c0_9] : memref<8x128xf32, #tpu.memory_space<vmem>>, vector<8x128xf32>
    tpu.vector_store %arg4[%c0_8, %c0_9], %13 {strides = array<i32>} : memref<8x128xf32, #tpu.memory_space<vmem>>, vector<8x128xf32>,
    return
  }
  func.func @transform_0(%arg0: i32) -> (i32, i32) {
    %c0_i32 = arith.constant 0 : i32
    %c0_i32_0 = arith.constant 0 : i32
    return %c0_i32, %arg0 : i32, i32
  }
  func.func @transform_1(%arg0: i32) -> (i32, i32) {
    %c0_i32 = arith.constant 0 : i32
    %c0_i32_0 = arith.constant 0 : i32
    %c0_i32_1 = arith.constant 0 : i32
    return %c0_i32, %c0_i32_0 : i32, i32
  }
  func.func @transform_2(%arg0: i32) -> (i32, i32) {
    %c0_i32 = arith.constant 0 : i32
    %c0_i32_0 = arith.constant 0 : i32
    %c0_i32_1 = arith.constant 0 : i32
    return %c0_i32, %c0_i32_0 : i32, i32
  }
  func.func @transform_3(%arg0: i32) -> (i32, i32) {
    %c0_i32 = arith.constant 0 : i32
    %c0_i32_0 = arith.constant 0 : i32
    return %c0_i32, %arg0 : i32, i32
  }
}

</mosaic_0001>

<llo_original>
// kernel: tpu_custom_call.1
$region0: #{tpu_custom_call.1}
  #allocation0 [shape = 'u32[]', space=smem, size = 0x4, offset = 0x4, fixed_abs, tag = 'smem constant byte address 0x4 - core index']
  #allocation1 [shape = 'u32[144,128]{1,0:T(1,128)}', space=vmem, size = 0x12000, scoped, tag = 'internal scratch']
  %s0 = inlined_call_operand.hbm [shape: f32[16,128], index: 0, kind: input, shape index: {}]
  %s1 = inlined_call_operand.vmem [shape: f32[8,16], index: 1, kind: input, shape index: {}]
  %s2 = inlined_call_operand.vmem [shape: f32[8,1], index: 2, kind: input, shape index: {}]
  %s3 = inlined_call_operand.hbm [shape: f32[8,128], index: 3, kind: output, shape index: {}]
  %s4 = sld [smem:[#allocation0]]
  $region26: #{tpu_custom_call.1} parent=0
    _
  %s6 = ssub.s32 1, %s4
  %s7 = scalar_select 0, %s6, %s4
  $region1: #{tpu_custom_call.1} parent=0
    #allocation2 [shape = 'u8[8192]{0}', space=vmem, size = 0x2000, scoped, tag = 'input window, operand 0, single buffered']
    #allocation3 [shape = 's32[1]{0}', space=sflag, size = 0x4, scoped, tag = 'scoped memory for tpu_custom_call.1']
    #allocation4 [shape = 's32[1]{0}', space=sflag, size = 0x4, scoped, tag = 'scoped memory for tpu_custom_call.1']
    #allocation5 [shape = 'u8[4096]{0}', space=vmem, size = 0x1000, scoped, tag = 'output window, operand 0, single buffered']
    %8 = vsyncpa [#allocation3], 0
    %9 = vsyncpa [#allocation4], 0
    // Predicated region
    $region2: #{tpu_custom_call.1} parent=1 // pred_check
      _
    $region3: #{tpu_custom_call.1} parent=1 // pred_check_branch
      %11 = sbr.rel (0) target = $region5
    $region4: #{tpu_custom_call.1} parent=1 // pred_region
      %s13 = ssub.s32 256, 256
      %14 = vsyncadd [#allocation3], %s13
      %s15 = sshll.u32 [#allocation2], 4
      %s16 = int_to_ptr.vmem [resolvable:$true] %s15
      %21 = dma.hbm_to_vmem [thread:$0]  %s0, 256, %s16, [#allocation3], 128, 128, 8
    $region5: #{tpu_custom_call.1} parent=1 // pred_fallthru
      _
    // Predicated region
    $region6: #{tpu_custom_call.1} parent=1 // pred_check
      _
    $region7: #{tpu_custom_call.1} parent=1 // pred_check_branch
      %23 = sbr.rel (0) target = $region9
    $region8: #{tpu_custom_call.1} parent=1 // pred_region
      _
    $region9: #{tpu_custom_call.1} parent=1 // pred_fallthru
      _
    // Predicated region
    $region10: #{tpu_custom_call.1} parent=1 // pred_check
      _
    $region11: #{tpu_custom_call.1} parent=1 // pred_check_branch
      %25 = sbr.rel (0) target = $region13
    $region12: #{tpu_custom_call.1} parent=1 // pred_region
      _
    $region13: #{tpu_custom_call.1} parent=1 // pred_fallthru
      _
    // Predicated region
    $region14: #{tpu_custom_call.1} parent=1 // pred_check
      _
    $region15: #{tpu_custom_call.1} parent=1 // pred_check_branch
      %27 = sbr.rel (0) target = $region17
    $region16: #{tpu_custom_call.1} parent=1 // pred_region
      %28 = dma.done [#allocation3], 256
    $region17: #{tpu_custom_call.1} parent=1 // pred_fallthru
      _
    %v29 = vld [vmem:[#allocation2] sm:$0xff]
    %v30 = vld [vmem:[#allocation2 + $0x8] sm:$0xff]
    %v31 = vld [vmem:[%s1] sm:$0xff]
    %v32 = vld [vmem:[%s2] sm:$0xff]
    %34 = vset.pattern.permute.xlu0 0
    %35 = vperm.xlu0 %34, %v32
    %v36 = vpop.permute.xlu0 %35
    %vm38 = vcmask 130048
    %v40 = vsel %vm38, %v31, 0
    %42 = vmatprep.subr.mxu0 0.0
    %43 = vmatpush1.msra.mxu0 %v29
    %44 = vmatprep.subr.mxu0 0.0
    %45 = vmatpush1.msra.mxu0 %v30
    %46 = vmatprep.subr.mxu0 0.0
    %47 = vmatpush1.msra.mxu0 0.0
    %48 = vmatprep.subr.mxu0 0.0
    %49 = vmatpush1.msra.mxu0 0.0
    %50 = vmatprep.subr.mxu0 0.0
    %51 = vmatpush1.msra.mxu0 0.0
    %52 = vmatprep.subr.mxu0 0.0
    %53 = vmatpush1.msra.mxu0 0.0
    %54 = vmatprep.subr.mxu0 0.0
    %55 = vmatpush1.msra.mxu0 0.0
    %56 = vmatprep.subr.mxu0 0.0
    %57 = vmatpush1.msra.mxu0 0.0
    %58 = vmatprep.subr.mxu0 0.0
    %59 = vmatpush1.msra.mxu0 0.0
    %60 = vmatprep.subr.mxu0 0.0
    %61 = vmatpush1.msra.mxu0 0.0
    %62 = vmatprep.subr.mxu0 0.0
    %63 = vmatpush1.msra.mxu0 0.0
    %64 = vmatprep.subr.mxu0 0.0
    %65 = vmatpush1.msra.mxu0 0.0
    %66 = vmatprep.subr.mxu0 0.0
    %67 = vmatpush1.msra.mxu0 0.0
    %68 = vmatprep.subr.mxu0 0.0
    %69 = vmatpush1.msra.mxu0 0.0
    %70 = vmatprep.subr.mxu0 0.0
    %71 = vmatpush1.msra.mxu0 0.0
    %72 = vmatprep.subr.mxu0 0.0
    %73 = vmatpush1.msra.mxu0 0.0
    %74 = vmatprep.subr.mxu0 0.0
    %75 = vmatpush1.msra.mxu0 0.0
    %76 = vmatprep.subr.mxu0 0.0
    %77 = vmatpush1.msra.mxu0 0.0
    %78 = vmatprep.subr.mxu0 0.0
    %79 = vmatpush1.msra.mxu0 0.0
    %80 = vmatprep.subr.mxu0 0.0
    %81 = vmatpush1.msra.mxu0 0.0
    %82 = vmatprep.subr.mxu0 0.0
    %83 = vmatpush1.msra.mxu0 0.0
    %84 = vmatprep.subr.mxu0 0.0
    %85 = vmatpush1.msra.mxu0 0.0
    %86 = vmatprep.subr.mxu0 0.0
    %87 = vmatpush1.msra.mxu0 0.0
    %88 = vmatprep.subr.mxu0 0.0
    %89 = vmatpush1.msra.mxu0 0.0
    %90 = vmatprep.subr.mxu0 0.0
    %91 = vmatpush1.msra.mxu0 0.0
    %92 = vmatprep.subr.mxu0 0.0
    %93 = vmatpush1.msra.mxu0 0.0
    %94 = vmatprep.subr.mxu0 0.0
    %95 = vmatpush1.msra.mxu0 0.0
    %96 = vmatprep.subr.mxu0 0.0
    %97 = vmatpush1.msra.mxu0 0.0
    %98 = vmatprep.subr.mxu0 0.0
    %99 = vmatpush1.msra.mxu0 0.0
    %100 = vmatprep.subr.mxu0 0.0
    %101 = vmatpush1.msra.mxu0 0.0
    %102 = vmatprep.subr.mxu0 0.0
    %103 = vmatpush1.msra.mxu0 0.0
    %104 = vmatprep.subr.mxu0 0.0
    %105 = vmatpush1.msra.mxu0 0.0
    %106 = vmatprep.mubr.f32.mxu0 0.0
    %107 = vmatmul.mubr.f32.gmra.mrb[0].mxu0 %v40
    %v108 = vpop.f32.mrb[0].mxu0
    %v109 = vadd.f32 %v36, %v108
    %v110 = vpop.f32.mrb[0].mxu0
    %111 = vdwg.mxu0
    %v112 = vsub.f32 0.0, %v109
    %v113 = vmul.f32 %v112, 1.442695
    %v114 = vpow.pop %v113
    %v115 = vadd.f32 %v114, 1.0
    %v116 = vrcp.pop %v115
    %v117 = vmul.f32 1.0, %v116
    %v118 = vmul.f32 %v109, %v117
    %119 = vst [vmem:[#allocation5] sm:$0xff] %v118
    // Predicated region
    $region18: #{tpu_custom_call.1} parent=1 // pred_check
      _
    $region19: #{tpu_custom_call.1} parent=1 // pred_check_branch
      %121 = sbr.rel (0) target = $region21
    $region20: #{tpu_custom_call.1} parent=1 // pred_region
      %s123 = ssub.s32 128, 128
      %124 = vsyncadd [#allocation4], %s123
      %s126 = sshll.u32 [#allocation5], 4
      %s127 = int_to_ptr.vmem [resolvable:$true] %s126
      %129 = dma.vmem_to_hbm [thread:$0]  %s127, 128, %s3, [#allocation4]
    $region21: #{tpu_custom_call.1} parent=1 // pred_fallthru
      _
    // Predicated region
    $region22: #{tpu_custom_call.1} parent=1 // pred_check
      _
    $region23: #{tpu_custom_call.1} parent=1 // pred_check_branch
      %131 = sbr.rel (0) target = $region25
    $region24: #{tpu_custom_call.1} parent=1 // pred_region
      %132 = dma.done [#allocation4], 128
    $region25: #{tpu_custom_call.1} parent=1 // pred_fallthru
      _
    %133 = vsyncpa [#allocation3], 1
    %134 = vsyncpa [#allocation4], 1

</llo_original>
